<compile_context>
chip_gen: v6e
topology: v6e:2x2x1
jax: 0.10.0
libtpu: 0.0.40
codegen_flags: <defaults>
</compile_context>

<pallas_src>
import functools
import math

import jax
import jax.numpy as jnp
from jax.experimental import pallas as pl
from jax.experimental.pallas import tpu as pltpu


def _dot_nt(a, b):
    # a @ b.T, contracting last dims, f32 accumulation on the MXU.
    return jax.lax.dot_general(a, b, (((1,), (1,)), ((), ())),
                               preferred_element_type=jnp.float32)


def _pick_tile(n, target):
    # Largest divisor of n that is <= target and a multiple of 8 (else n itself).
    for cand in range(min(n, target), 0, -1):
        if n % cand == 0 and (cand % 8 == 0 or cand == n):
            return cand
    return n


def _vmem_limit_bytes():
    cap = 64 * 1024 * 1024
    try:
        cap = int(getattr(pltpu.get_tpu_info(), "vmem_capacity_bytes", cap))
    except Exception:
        pass
    # leave headroom: <= 3/4 of physical, capped at 100 MiB
    # (-> ~96 MiB on v5e/v6e's 128 MiB, ~48 MiB on v7x's 64 MiB per TC).
    return int(min(100 * 1024 * 1024, cap * 3 // 4))


# ---------------- Pallas kernels ----------------

def _qkv_kernel(w_ref, wqkv_ref, out_ref, *, n_head, d_head):
    # One big MXU matmul [TQ, d_model] @ [d_model, 3*H*D] (bf16 operands, f32
    # accumulation), then a one-touch head-major scatter of the result so the
    # attention kernel never has to lane-slice q/k/v per head.
    H, D = n_head, d_head
    y = _dot_nt(w_ref[0], wqkv_ref[...]).astype(jnp.bfloat16)   # [TQ, 3*H*D]
    for c in range(3):              # 0:q 1:k 2:v (torch qkv_net column order)
        for h in range(H):
            base = (c * H + h) * D
            out_ref[0, c, h] = y[:, base:base + D]


def _rel_shift_tile(x, x_next, i0, *, klen, nbits):
    # Exact torch _rel_shift for a q-tile of global rows [i0, i0+T) (klen == qlen):
    #   BD[i, j] = X[i,   j + klen-1-i]  if j <= i
    #            = 0                     if j == i+1
    #            = X[i+1, j - i - 2]     if j >= i+2
    # All branches are the SAME per-row right-roll by (i+1) of a merged source,
    # so only ONE binary-decomposed roll chain is needed (halves XLU/VALU work).
    T = x.shape[0]
    loc = jax.lax.broadcasted_iota(jnp.int32, (T, 1), 0)
    row_g = loc + i0                                           # global row index
    col = jax.lax.broadcasted_iota(jnp.int32, (T, klen), 1)
    # X[i+1, :]: within-tile up-shift; last local row supplied by the next tile.
    x_up = jnp.roll(x, -1, axis=0)
    x_up = jnp.where(loc == T - 1, x_next, x_up)
    # merged pre-roll source
    src = jnp.where(col >= klen - 1 - row_g, x,
                    jnp.where(col == 0, 0.0, jnp.roll(x_up, 1, axis=1)))
    shift = (row_g + 1) % klen
    out = src
    for b in range(nbits):
        amt = 1 << b
        out = jnp.where((shift & amt) != 0, jnp.roll(out, amt, axis=1), out)
    return out


def _attn_kernel(q_ref, qn_ref, k_ref, v_ref, re_ref, rb_ref, rwb_ref, out_ref, *,
                 klen, q_tile, nbits):
    # One (batch, head, q-tile) step.  q arrives pre-scaled (softmax scale folded
    # into the q rows of W_qkv); rb / rwb are pre-scaled too, so the [T, klen]
    # score tile is never multiplied by `scale`.  K/V/re/rb/rwb have constant
    # index_maps along the q-tile axis -> fetched once per (batch, head).
    i0 = pl.program_id(2) * q_tile
    q = q_ref[0, 0, 0]                     # [T, D]    bf16 (pre-scaled)
    k = k_ref[0, 0, 0]                     # [klen, D] bf16
    v = v_ref[0, 0, 0]                     # [klen, D] bf16
    re = re_ref[0]                         # [D, klen] bf16 (klen lane-dense)
    rb = rb_ref[0]                         # [1, klen] f32  (pre-scaled)
    rwb = rwb_ref[0]                       # [1, D]    bf16 (pre-scaled)

    ac = _dot_nt(q + rwb, k)                                            # [T, klen] f32
    x = jnp.dot(q, re, preferred_element_type=jnp.float32) + rb         # B_ + D_
    # first row of the next q tile -> X[i0+T, :] for the rel-shift boundary row
    qn = qn_ref[0, 0, 0, 0:1]                                           # [1, D]
    x_next = jnp.dot(qn, re, preferred_element_type=jnp.float32) + rb   # [1, klen]
    bd = _rel_shift_tile(x, x_next, i0, klen=klen, nbits=nbits)

    s = ac + bd                                                         # already scaled
    m = jnp.max(s, axis=-1, keepdims=True)
    p = jnp.exp(s - m)
    denom = jnp.sum(p, axis=-1, keepdims=True)
    prob = p * pl.reciprocal(denom, approx=True)                        # EUP reciprocal
    o = jnp.dot(prob.astype(jnp.bfloat16), v, preferred_element_type=jnp.float32)
    out_ref[0, 0] = o.astype(out_ref.dtype)


def _out_kernel(vec_ref, wo_ref, w_ref, g_ref, b_ref, out_ref, *, n_head, eps):
    # head-major output projection (bf16 MXU, f32 acc) + residual + LayerNorm (f32)
    acc = _dot_nt(vec_ref[0, 0], wo_ref[0])               # [TQ, d_model] f32
    for h in range(1, n_head):
        acc += _dot_nt(vec_ref[0, h], wo_ref[h])
    y = w_ref[0] + acc
    mean = jnp.mean(y, axis=-1, keepdims=True)
    var = jnp.mean((y - mean) ** 2, axis=-1, keepdims=True)
    norm = (y - mean) * jax.lax.rsqrt(var + eps)
    out_ref[0] = norm * g_ref[...] + b_ref[...]


# ---------------- wrapper ----------------

def rel_learnable_mha(w, r_emb, r_w_bias, r_bias, W_qkv, W_o, ln_g, ln_b,
                      n_head, d_head, *, eps=1e-5):
    qlen, bsz, d_model = w.shape
    klen = qlen                          # TODO(synk): mems not supported (klen == qlen)
    H, D = n_head, d_head
    scale = 1.0 / (D ** 0.5)

    TQ = _pick_tile(qlen, 512)           # row tile for projection / out kernels
    TQA = _pick_tile(qlen, 256)          # q tile for the attention kernel
    nq, nqa = qlen // TQ, qlen // TQA
    nbits = max(1, (klen - 1).bit_length())
    vmem_limit = _vmem_limit_bytes()

    def cparams(sem):
        return pltpu.CompilerParams(dimension_semantics=sem,
                                    vmem_limit_bytes=vmem_limit)

    # one cheap transpose to batch-major; f32 copy kept only for the residual,
    # a bf16 copy feeds the QKV matmul (halves its streamed activation bytes).
    w_b = jnp.swapaxes(w, 0, 1)                          # [bsz, qlen, d_model] f32
    w_bf = w_b.astype(jnp.bfloat16)

    # slice / pad relative params to klen (mirrors the torch branch; tiny glue)
    if klen > r_emb.shape[0]:
        pad_e = jnp.broadcast_to(r_emb[0:1], (klen - r_emb.shape[0],) + r_emb.shape[1:])
        r_emb_k = jnp.concatenate([pad_e, r_emb], 0)
        pad_b = jnp.broadcast_to(r_bias[0:1], (klen - r_bias.shape[0],) + r_bias.shape[1:])
        r_bias_k = jnp.concatenate([pad_b, r_bias], 0)
    else:
        r_emb_k = r_emb[-klen:]
        r_bias_k = r_bias[-klen:]

    # head-major relative params; softmax scale folded into q-rows of W_qkv,
    # r_bias and r_w_bias (so the kernel never scales the score tile).
    re_hm = jnp.transpose(r_emb_k, (1, 2, 0)).astype(jnp.bfloat16)            # [H, D, klen]
    rb_hm = (jnp.transpose(r_bias_k, (1, 0)) * scale).reshape(H, 1, klen).astype(jnp.float32)
    rwb = (r_w_bias * scale).astype(jnp.bfloat16).reshape(H, 1, D)            # [H, 1, D]
    wqkv_b = jnp.concatenate([W_qkv[:H * D] * scale, W_qkv[H * D:]], 0).astype(jnp.bfloat16)
    wo_hm = jnp.transpose(W_o.reshape(d_model, H, D), (1, 0, 2)).astype(jnp.bfloat16)  # [H, d_model, D]

    # ---- (1) QKV projection -> head-major [bsz, 3, H, qlen, D] ----
    qkv_hm = pl.pallas_call(
        functools.partial(_qkv_kernel, n_head=H, d_head=D),
        out_shape=jax.ShapeDtypeStruct((bsz, 3, H, qlen, D), jnp.bfloat16),
        grid=(bsz, nq),
        in_specs=[pl.BlockSpec((1, TQ, d_model), lambda b, t: (b, t, 0)),
                  pl.BlockSpec((3 * H * D, d_model), lambda b, t: (0, 0))],
        out_specs=pl.BlockSpec((1, 3, H, TQ, D), lambda b, t: (b, 0, 0, t, 0)),
        compiler_params=cparams(("parallel", "parallel")),
    )(w_bf, wqkv_b)

    # ---- (2) fused attention: grid (bsz, head, q-tile); scores stay in VMEM ----
    attn = pl.pallas_call(
        functools.partial(_attn_kernel, klen=klen, q_tile=TQA, nbits=nbits),
        out_shape=jax.ShapeDtypeStruct((bsz, H, qlen, D), jnp.bfloat16),
        grid=(bsz, H, nqa),
        in_specs=[
            pl.BlockSpec((1, 1, 1, TQA, D), lambda b, h, t: (b, 0, h, t, 0)),       # q tile
            pl.BlockSpec((1, 1, 1, TQA, D),
                         lambda b, h, t: (b, 0, h, jnp.minimum(t + 1, nqa - 1), 0)),  # next q tile
            pl.BlockSpec((1, 1, 1, klen, D), lambda b, h, t: (b, 1, h, 0, 0)),      # K (resident)
            pl.BlockSpec((1, 1, 1, klen, D), lambda b, h, t: (b, 2, h, 0, 0)),      # V (resident)
            pl.BlockSpec((1, D, klen), lambda b, h, t: (h, 0, 0)),                  # r_emb
            pl.BlockSpec((1, 1, klen), lambda b, h, t: (h, 0, 0)),                  # r_bias
            pl.BlockSpec((1, 1, D), lambda b, h, t: (h, 0, 0)),                     # r_w_bias
        ],
        out_specs=pl.BlockSpec((1, 1, TQA, D), lambda b, h, t: (b, h, t, 0)),
        compiler_params=cparams(("parallel", "parallel", "parallel")),
    )(qkv_hm, qkv_hm, qkv_hm, qkv_hm, re_hm, rb_hm, rwb)

    # ---- (3) output projection + residual + LayerNorm ----
    out_b = pl.pallas_call(
        functools.partial(_out_kernel, n_head=H, eps=eps),
        out_shape=jax.ShapeDtypeStruct((bsz, qlen, d_model), jnp.float32),
        grid=(bsz, nq),
        in_specs=[pl.BlockSpec((1, H, TQ, D), lambda b, t: (b, 0, t, 0)),
                  pl.BlockSpec((H, d_model, D), lambda b, t: (0, 0, 0)),
                  pl.BlockSpec((1, TQ, d_model), lambda b, t: (b, t, 0)),
                  pl.BlockSpec((1, d_model), lambda b, t: (0, 0)),
                  pl.BlockSpec((1, d_model), lambda b, t: (0, 0))],
        out_specs=pl.BlockSpec((1, TQ, d_model), lambda b, t: (b, t, 0)),
        compiler_params=cparams(("parallel", "parallel")),
    )(attn, wo_hm, w_b, ln_g.reshape(1, d_model), ln_b.reshape(1, d_model))

    return jnp.swapaxes(out_b, 0, 1)


# ---------------- pure-JAX reference (mirrors the torch forward) ----------------

def reference(w, r_emb, r_w_bias, r_bias, W_qkv, W_o, ln_g, ln_b, n_head, d_head, eps=1e-5):
    qlen, bsz, d_model = w.shape
    klen = qlen
    hp = jax.lax.Precision.HIGHEST
    w_heads = jnp.einsum('qbm,om->qbo', w, W_qkv, precision=hp)
    q, k, v = jnp.split(w_heads, 3, -1)
    q = q.reshape(qlen, bsz, n_head, d_head)
    k = k.reshape(klen, bsz, n_head, d_head)
    v = v.reshape(klen, bsz, n_head, d_head)
    r_emb_ = r_emb[-klen:]
    r_bias_ = r_bias[-klen:]
    rwq = q + r_w_bias[None]
    AC = jnp.einsum('ibnd,jbnd->ijbn', rwq, k, precision=hp)
    B_ = jnp.einsum('ibnd,jnd->ijbn', q, r_emb_, precision=hp)
    D_ = r_bias_[None, :, None]
    X = B_ + D_
    zp = jnp.zeros((qlen, 1, bsz, n_head), X.dtype)
    xp = jnp.concatenate([zp, X], axis=1).reshape(klen + 1, qlen, bsz, n_head)
    BD = xp[1:].reshape(qlen, klen, bsz, n_head)
    score = (AC + BD) * (1.0 / d_head ** 0.5)
    prob = jax.nn.softmax(score, axis=1)
    vec = jnp.einsum('ijbn,jbnd->ibnd', prob, v, precision=hp)
    vec = vec.reshape(qlen, bsz, n_head * d_head)
    out = jnp.einsum('qbh,mh->qbm', vec, W_o, precision=hp)
    y = w + out
    mean = y.mean(-1, keepdims=True)
    var = ((y - mean) ** 2).mean(-1, keepdims=True)
    return (y - mean) / jnp.sqrt(var + eps) * ln_g + ln_b


if __name__ == "__main__":
    n_head, d_head, d_model = 2, 8, 32
    qlen, bsz, tgt_len = 8, 2, 8

    key = jax.random.PRNGKey(0)
    ks = jax.random.split(key, 6)
    w = jax.random.normal(ks[0], (qlen, bsz, d_model), jnp.float32) * 0.5
    r_emb = jax.random.normal(ks[1], (tgt_len, n_head, d_head), jnp.float32) * 0.5
    r_w_bias = jax.random.normal(ks[2], (n_head, d_head), jnp.float32) * 0.5
    r_bias = jax.random.normal(ks[3], (tgt_len, n_head), jnp.float32) * 0.5
    # torch Linear weight layout: [out, in]
    W_qkv = jax.random.normal(ks[4], (3 * n_head * d_head, d_model), jnp.float32) * (1.0 / math.sqrt(d_model))
    W_o = jax.random.normal(ks[5], (d_model, n_head * d_head), jnp.float32) * (1.0 / math.sqrt(n_head * d_head))
    ln_g = jnp.ones((d_model,), jnp.float32)
    ln_b = jnp.zeros((d_model,), jnp.float32)

    out = rel_learnable_mha(w, r_emb, r_w_bias, r_bias, W_qkv, W_o, ln_g, ln_b,
                            n_head, d_head)
    out = jax.block_until_ready(out)

    ref = reference(w, r_emb, r_w_bias, r_bias, W_qkv, W_o, ln_g, ln_b, n_head, d_head)
    assert out.shape == (qlen, bsz, d_model)
    # tolerance sized for bf16 MXU operands / approx reciprocal vs the f32 reference
    assert jnp.allclose(out, ref, atol=6e-2, rtol=6e-2), "mismatch vs pure-JAX reference"

    print("KERNEL_OK")
</pallas_src>

<mosaic_0001>
module attributes {stable_mosaic.version = 11 : i64} {
  func.func @_qkv_kernel(%arg0: i32, %arg1: i32, %arg2: memref<1x8x32xbf16, #tpu.memory_space<vmem>>, %arg3: memref<48x32xbf16, #tpu.memory_space<vmem>>, %arg4: memref<1x3x2x8x8xbf16, #tpu.memory_space<vmem>>) attributes {dimension_semantics = [#tpu.dimension_semantics<parallel>, #tpu.dimension_semantics<parallel>], iteration_bounds = array<i64: 2, 1>, scalar_prefetch = 0 : i64, scratch_operands = 0 : i64, tpu.core_type = #tpu.core_type<tc>, window_params = [{transform_indices = @transform_0, window_bounds = array<i64: 1, 8, 32>}, {pipeline_mode = #tpu.pipeline_mode<synchronous>, transform_indices = @transform_1, window_bounds = array<i64: 48, 32>}, {transform_indices = @transform_2, window_bounds = array<i64: 1, 3, 2, 8, 8>}]} {
    %c0 = arith.constant 0 : index
    %c0_0 = arith.constant 0 : index
    %c0_1 = arith.constant 0 : index
    %0 = vector.load %arg2[%c0, %c0_0, %c0_1] : memref<1x8x32xbf16, #tpu.memory_space<vmem>>, vector<1x8x32xbf16>
    %1 = vector.shape_cast %0 : vector<1x8x32xbf16> to vector<8x32xbf16>
    %c0_2 = arith.constant 0 : index
    %c0_3 = arith.constant 0 : index
    %2 = vector.load %arg3[%c0_2, %c0_3] : memref<48x32xbf16, #tpu.memory_space<vmem>>, vector<48x32xbf16>
    %cst = arith.constant dense<0.000000e+00> : vector<8x48xf32>
    %3 = tpu.matmul %1, %2, %cst {dimension_numbers = #tpu.dot_dimension_numbers<[1], [1], [0], [0], [0, 0, 1, 0], [], []>} : vector<8x32xbf16>, vector<48x32xbf16>, vector<8x48xf32> -> vector<8x48xf32>
    %4 = arith.truncf %3 : vector<8x48xf32> to vector<8x48xbf16>
    %5 = vector.extract_strided_slice %4 {offsets = [0, 0], sizes = [8, 8], strides = [1, 1]} : vector<8x48xbf16> to vector<8x8xbf16>
    %c0_4 = arith.constant 0 : index
    %c0_5 = arith.constant 0 : index
    %c0_6 = arith.constant 0 : index
    %c0_7 = arith.constant 0 : index
    %c0_8 = arith.constant 0 : index
    %6 = vector.load %arg4[%c0_4, %c0_5, %c0_6, %c0_7, %c0_8] : memref<1x3x2x8x8xbf16, #tpu.memory_space<vmem>>, vector<1x1x1x8x8xbf16>
    %7 = vector.shape_cast %6 : vector<1x1x1x8x8xbf16> to vector<8x8xbf16>
    %8 = vector.shape_cast %5 : vector<8x8xbf16> to vector<1x1x1x8x8xbf16>
    tpu.vector_store %arg4[%c0_4, %c0_5, %c0_6, %c0_7, %c0_8], %8 {strides = array<i32>} : memref<1x3x2x8x8xbf16, #tpu.memory_space<vmem>>, vector<1x1x1x8x8xbf16>,
    %9 = vector.extract_strided_slice %4 {offsets = [0, 8], sizes = [8, 8], strides = [1, 1]} : vector<8x48xbf16> to vector<8x8xbf16>
    %c0_9 = arith.constant 0 : index
    %c0_10 = arith.constant 0 : index
    %c1 = arith.constant 1 : index
    %c0_11 = arith.constant 0 : index
    %c0_12 = arith.constant 0 : index
    %10 = vector.load %arg4[%c0_9, %c0_10, %c1, %c0_11, %c0_12] : memref<1x3x2x8x8xbf16, #tpu.memory_space<vmem>>, vector<1x1x1x8x8xbf16>
    %11 = vector.shape_cast %10 : vector<1x1x1x8x8xbf16> to vector<8x8xbf16>
    %12 = vector.shape_cast %9 : vector<8x8xbf16> to vector<1x1x1x8x8xbf16>
    tpu.vector_store %arg4[%c0_9, %c0_10, %c1, %c0_11, %c0_12], %12 {strides = array<i32>} : memref<1x3x2x8x8xbf16, #tpu.memory_space<vmem>>, vector<1x1x1x8x8xbf16>,
    %13 = vector.extract_strided_slice %4 {offsets = [0, 16], sizes = [8, 8], strides = [1, 1]} : vector<8x48xbf16> to vector<8x8xbf16>
    %c0_13 = arith.constant 0 : index
    %c1_14 = arith.constant 1 : index
    %c0_15 = arith.constant 0 : index
    %c0_16 = arith.constant 0 : index
    %c0_17 = arith.constant 0 : index
    %14 = vector.load %arg4[%c0_13, %c1_14, %c0_15, %c0_16, %c0_17] : memref<1x3x2x8x8xbf16, #tpu.memory_space<vmem>>, vector<1x1x1x8x8xbf16>
    %15 = vector.shape_cast %14 : vector<1x1x1x8x8xbf16> to vector<8x8xbf16>
    %16 = vector.shape_cast %13 : vector<8x8xbf16> to vector<1x1x1x8x8xbf16>
    tpu.vector_store %arg4[%c0_13, %c1_14, %c0_15, %c0_16, %c0_17], %16 {strides = array<i32>} : memref<1x3x2x8x8xbf16, #tpu.memory_space<vmem>>, vector<1x1x1x8x8xbf16>,
    %17 = vector.extract_strided_slice %4 {offsets = [0, 24], sizes = [8, 8], strides = [1, 1]} : vector<8x48xbf16> to vector<8x8xbf16>
    %c0_18 = arith.constant 0 : index
    %c1_19 = arith.constant 1 : index
    %c1_20 = arith.constant 1 : index
    %c0_21 = arith.constant 0 : index
    %c0_22 = arith.constant 0 : index
    %18 = vector.load %arg4[%c0_18, %c1_19, %c1_20, %c0_21, %c0_22] : memref<1x3x2x8x8xbf16, #tpu.memory_space<vmem>>, vector<1x1x1x8x8xbf16>
    %19 = vector.shape_cast %18 : vector<1x1x1x8x8xbf16> to vector<8x8xbf16>
    %20 = vector.shape_cast %17 : vector<8x8xbf16> to vector<1x1x1x8x8xbf16>
    tpu.vector_store %arg4[%c0_18, %c1_19, %c1_20, %c0_21, %c0_22], %20 {strides = array<i32>} : memref<1x3x2x8x8xbf16, #tpu.memory_space<vmem>>, vector<1x1x1x8x8xbf16>,
    %21 = vector.extract_strided_slice %4 {offsets = [0, 32], sizes = [8, 8], strides = [1, 1]} : vector<8x48xbf16> to vector<8x8xbf16>
    %c0_23 = arith.constant 0 : index
    %c2 = arith.constant 2 : index
    %c0_24 = arith.constant 0 : index
    %c0_25 = arith.constant 0 : index
    %c0_26 = arith.constant 0 : index
    %22 = vector.load %arg4[%c0_23, %c2, %c0_24, %c0_25, %c0_26] : memref<1x3x2x8x8xbf16, #tpu.memory_space<vmem>>, vector<1x1x1x8x8xbf16>
    %23 = vector.shape_cast %22 : vector<1x1x1x8x8xbf16> to vector<8x8xbf16>
    %24 = vector.shape_cast %21 : vector<8x8xbf16> to vector<1x1x1x8x8xbf16>
    tpu.vector_store %arg4[%c0_23, %c2, %c0_24, %c0_25, %c0_26], %24 {strides = array<i32>} : memref<1x3x2x8x8xbf16, #tpu.memory_space<vmem>>, vector<1x1x1x8x8xbf16>,
    %25 = vector.extract_strided_slice %4 {offsets = [0, 40], sizes = [8, 8], strides = [1, 1]} : vector<8x48xbf16> to vector<8x8xbf16>
    %c0_27 = arith.constant 0 : index
    %c2_28 = arith.constant 2 : index
    %c1_29 = arith.constant 1 : index
    %c0_30 = arith.constant 0 : index
    %c0_31 = arith.constant 0 : index
    %26 = vector.load %arg4[%c0_27, %c2_28, %c1_29, %c0_30, %c0_31] : memref<1x3x2x8x8xbf16, #tpu.memory_space<vmem>>, vector<1x1x1x8x8xbf16>
    %27 = vector.shape_cast %26 : vector<1x1x1x8x8xbf16> to vector<8x8xbf16>
    %28 = vector.shape_cast %25 : vector<8x8xbf16> to vector<1x1x1x8x8xbf16>
    tpu.vector_store %arg4[%c0_27, %c2_28, %c1_29, %c0_30, %c0_31], %28 {strides = array<i32>} : memref<1x3x2x8x8xbf16, #tpu.memory_space<vmem>>, vector<1x1x1x8x8xbf16>,
    return
  }
  func.func @transform_0(%arg0: i32, %arg1: i32) -> (i32, i32, i32) {
    %c0_i32 = arith.constant 0 : i32
    %c0_i32_0 = arith.constant 0 : i32
    return %arg0, %arg1, %c0_i32 : i32, i32, i32
  }
  func.func @transform_1(%arg0: i32, %arg1: i32) -> (i32, i32) {
    %c0_i32 = arith.constant 0 : i32
    %c0_i32_0 = arith.constant 0 : i32
    %c0_i32_1 = arith.constant 0 : i32
    return %c0_i32, %c0_i32_0 : i32, i32
  }
  func.func @transform_2(%arg0: i32, %arg1: i32) -> (i32, i32, i32, i32, i32) {
    %c0_i32 = arith.constant 0 : i32
    %c0_i32_0 = arith.constant 0 : i32
    %c0_i32_1 = arith.constant 0 : i32
    %c0_i32_2 = arith.constant 0 : i32
    return %arg0, %c0_i32, %c0_i32_0, %arg1, %c0_i32_1 : i32, i32, i32, i32, i32
  }
}

</mosaic_0001>

<llo_original>
// kernel: tpu_custom_call.1
$region0: #{tpu_custom_call.1}
  #allocation0 [shape = 'u32[]', space=smem, size = 0x4, offset = 0x4, fixed_abs, tag = 'smem constant byte address 0x4 - core index']
  #allocation1 [shape = 'u32[144,128]{1,0:T(1,128)}', space=vmem, size = 0x12000, scoped, tag = 'internal scratch']
  %s0 = inlined_call_operand.vmem [shape: bf16[2,8,32], index: 0, kind: input, shape index: {}]
  %s1 = inlined_call_operand.vmem [shape: bf16[48,32], index: 1, kind: input, shape index: {}]
  %s2 = inlined_call_operand.hbm [shape: bf16[2,3,2,8,8], index: 2, kind: output, shape index: {}]
  %s3 = sld [smem:[#allocation0]]
  $region41: #{tpu_custom_call.1} parent=0
    _
  %s5 = ssub.s32 1, %s3
  %s6 = scalar_select 0, %s5, %s3
  $region1: #{tpu_custom_call.1} parent=0
    #allocation2 [shape = 'u8[24576]{0}', space=vmem, size = 0x6000, scoped, tag = 'output window, operand 0']
    #allocation3 [shape = 's32[2]{0}', space=sflag, size = 0x8, scoped, tag = 'scoped memory for tpu_custom_call.1']
    %7 = vsyncpa [#allocation3], 0
    %s8 = scalar_lea.sflag [#allocation3], 1
    %9 = vsyncpa %s8, 0
    loop: start=0, step=1, limit=4
    $region2: #{tpu_custom_call.1} parent=1 // loop_pre_header
      _
    $region3: #{tpu_custom_call.1} parent=1 // loop_header
      %s11 = sphi 0, %s15
      %p12 = scmp.ge.s32.totalorder %s11, 4
      %s18 = sphi 0, %s30
      %s19 = sphi 0, %s26
      %s20 = sphi 0, %s18
      %s21 = sphi 0, %s19
      %s22 = sphi 0, %s20
      %s23 = sphi 0, %s21
      %s35 = sphi 0, %s37
      %s38 = sphi 0, %s35
      %s39 = sphi 0, %s38
      %s55 = sphi 0, %s39
      %s59 = sphi 0, %s59
      %s61 = sphi 0, %s59
      %s62 = sphi 0, %s61
      %s76 = sphi 0, %s62
      %s84 = sphi 0, %s86
      %s87 = sphi 0, %s84
      %s88 = sphi 0, %s87
      %s104 = sphi 0, %s88
    $region4: #{tpu_custom_call.1} parent=1 // loop_header_branch
      %14 = sbr.rel (%p12) target = $region8
    $region5: #{tpu_custom_call.1} parent=1 // loop_body
      %s16 = ssub.s32 %s11, 1
      %s17 = ssub.s32 %s11, 2
      %s24 = sadd.s32 1, %s19
      %p25 = scmp.ge.s32.totalorder %s24, 1
      %s26 = scalar_select %p25, 0, %s24
      %s27 = sadd.s32 1, %s18
      %s28 = scalar_select %p25, %s27, %s18
      %p29 = scmp.ge.s32.totalorder %s28, 2
      %s30 = scalar_select %p29, 0, %s28
      %s31 = ssub.s32 %s18, %s30
      %s32 = ssub.s32 %s19, %s26
      %s33 = sor.u32 %s31, %s32
      %p34 = scmp.eq.s32.totalorder %s33, 0
      %s36 = sadd.s32 %s35, 1
      %s37 = scalar_select %p34, %s35, %s36
      %p40 = pneg %p34
      %p41 = scmp.eq.s32.totalorder %s11, 1
      %p42 = por %p40, %p41
      %p43 = scmp.ne.s32.totalorder %s35, %s38
      %p44 = scmp.eq.s32.totalorder %s11, 0
      %p45 = por %p43, %p44
      %p46 = scmp.ne.s32.totalorder %s35, %s38
      %p47 = scmp.eq.s32.totalorder %s16, 1
      %p48 = por %p46, %p47
      %p49 = scmp.ne.s32.totalorder %s38, %s39
      %p50 = scmp.eq.s32.totalorder %s16, 0
      %p51 = por %p49, %p50
      %p52 = scmp.ne.s32.totalorder %s38, %s39
      %p53 = scmp.eq.s32.totalorder %s17, 1
      %p54 = por %p52, %p53
      %p56 = scmp.ne.s32.totalorder %s39, %s55
      %p57 = scmp.eq.s32.totalorder %s17, 0
      %p58 = por %p56, %p57
      %s60 = sadd.s32 %s59, 1
      %p63 = scmp.eq.s32.totalorder %s11, 1
      %p64 = scmp.ne.s32.totalorder %s59, %s61
      %p65 = scmp.eq.s32.totalorder %s11, 0
      %p66 = por %p64, %p65
      %p67 = scmp.ne.s32.totalorder %s59, %s61
      %p68 = scmp.eq.s32.totalorder %s16, 1
      %p69 = por %p67, %p68
      %p70 = scmp.ne.s32.totalorder %s61, %s62
      %p71 = scmp.eq.s32.totalorder %s16, 0
      %p72 = por %p70, %p71
      %p73 = scmp.ne.s32.totalorder %s61, %s62
      %p74 = scmp.eq.s32.totalorder %s17, 1
      %p75 = por %p73, %p74
      %p77 = scmp.ne.s32.totalorder %s62, %s76
      %p78 = scmp.eq.s32.totalorder %s17, 0
      %p79 = por %p77, %p78
      %s80 = ssub.s32 %s18, %s30
      %s81 = ssub.s32 %s19, %s26
      %s82 = sor.u32 %s80, %s81
      %p83 = scmp.eq.s32.totalorder %s82, 0
      %s85 = sadd.s32 %s84, 1
      %s86 = scalar_select %p83, %s84, %s85
      %p89 = pneg %p83
      %p90 = scmp.eq.s32.totalorder %s11, 1
      %p91 = por %p89, %p90
      %p92 = scmp.ne.s32.totalorder %s84, %s87
      %p93 = scmp.eq.s32.totalorder %s11, 0
      %p94 = por %p92, %p93
      %p95 = scmp.ne.s32.totalorder %s84, %s87
      %p96 = scmp.eq.s32.totalorder %s16, 1
      %p97 = por %p95, %p96
      %p98 = scmp.ne.s32.totalorder %s87, %s88
      %p99 = scmp.eq.s32.totalorder %s16, 0
      %p100 = por %p98, %p99
      %p101 = scmp.ne.s32.totalorder %s87, %s88
      %p102 = scmp.eq.s32.totalorder %s17, 1
      %p103 = por %p101, %p102
      %p105 = scmp.ne.s32.totalorder %s88, %s104
      %p106 = scmp.eq.s32.totalorder %s17, 0
      %p107 = por %p105, %p106
      %p108 = scmp.le.s32.totalorder 1, %s11
      %p109 = scmp.lt.s32.totalorder %s11, 3
      %p110 = pnand %p108, %p109
      %p111 = pneg %p110
      // Predicated region
      $region9: #{tpu_custom_call.1} parent=5 // pred_check
        _
      $region10: #{tpu_custom_call.1} parent=5 // pred_check_branch
        %113 = sbr.rel (%p110) target = $region12
      $region11: #{tpu_custom_call.1} parent=5 // pred_region
        %s114 = ssub.s32 %s11, 1
        // Predicated region
        $region13: #{tpu_custom_call.1} parent=11 // pred_check
          %p115 = pneg %p72
        $region14: #{tpu_custom_call.1} parent=11 // pred_check_branch
          %117 = sbr.rel (%p115) target = $region16
        $region15: #{tpu_custom_call.1} parent=11 // pred_region
          _
        $region16: #{tpu_custom_call.1} parent=11 // pred_fallthru
          _
      $region12: #{tpu_custom_call.1} parent=5 // pred_fallthru
        _
      %p118 = scmp.lt.s32.totalorder %s11, 2
      // Predicated region
      $region17: #{tpu_custom_call.1} parent=5 // pred_check
        %p119 = pneg %p118
      $region18: #{tpu_custom_call.1} parent=5 // pred_check_branch
        %121 = sbr.rel (%p119) target = $region20
      $region19: #{tpu_custom_call.1} parent=5 // pred_region
        // Predicated region
        $region21: #{tpu_custom_call.1} parent=19 // pred_check
          %p122 = pneg %p45
        $region22: #{tpu_custom_call.1} parent=19 // pred_check_branch
          %124 = sbr.rel (%p122) target = $region24
        $region23: #{tpu_custom_call.1} parent=19 // pred_region
          %p125 = scmp.lt.s32.totalorder %s18, 1
          %s126 = scalar_select %p125, %s18, 1
          %p127 = scmp.lt.s32.totalorder %s19, 0
          %s128 = scalar_select %p127, %s19, 0
          %s129 = sadd.s32 %s128, %s126
          %s130 = smul.addr %s129, 4
          %s131 = scalar_lea.vmem %s0, %s130
        $region24: #{tpu_custom_call.1} parent=19 // pred_fallthru
          _
      $region20: #{tpu_custom_call.1} parent=5 // pred_fallthru
        _
      %p132 = scmp.le.s32.totalorder 1, %s11
      %p133 = scmp.lt.s32.totalorder %s11, 3
      %p134 = pnand %p132, %p133
      %p135 = pneg %p134
      // Predicated region
      $region25: #{tpu_custom_call.1} parent=5 // pred_check
        _
      $region26: #{tpu_custom_call.1} parent=5 // pred_check_branch
        %137 = sbr.rel (%p134) target = $region28
      $region27: #{tpu_custom_call.1} parent=5 // pred_region
        %s138 = ssub.s32 %s11, 1
        %p139 = scmp.lt.s32.totalorder %s20, 1
        %s140 = scalar_select %p139, %s20, 1
        %p141 = scmp.lt.s32.totalorder %s21, 0
        %s142 = scalar_select %p141, %s21, 0
        %s143 = sadd.s32 %s142, %s140
        %s144 = smul.addr %s143, 4
        %s145 = scalar_lea.vmem %s0, %s144
        %p146 = pneg %p51
        %p147 = pneg %p48
        %p148 = pneg %p72
        %p149 = pneg %p69
        %p150 = pneg %p100
        %p151 = pneg %p97
        %s152 = sand.u32 %s87, 1
        %s153 = scalar_lea.sflag [#allocation3], %s152
        %s154 = sand.u32 %s87, 1
        %s155 = smul.addr %s154, 24
        %s156 = scalar_lea.vmem [#allocation2], %s155
        %p157 = scmp.lt.s32.totalorder %s20, 1
        %s158 = scalar_select %p157, %s20, 1
        %p159 = scmp.lt.s32.totalorder %s21, 0
        %s160 = scalar_select %p159, %s21, 0
        %s161 = sadd.s32 %s160, %s158
        %s162 = smul.addr %s161, 4
        %s163 = scalar_lea.vmem %s0, %s162
        %v165 = vld [vmem:[%s163] sm:$0xf]
        %v166 = vld [vmem:[%s1] sm:$0xf]
        %v167 = vld [vmem:[%s1 + $0x4] sm:$0xf]
        %v168 = vld [vmem:[%s1 + $0x8] sm:$0xf]
        %v169 = vld [vmem:[%s1 + $0xc] sm:$0xf]
        %v170 = vld [vmem:[%s1 + $0x10] sm:$0xf]
        %v171 = vld [vmem:[%s1 + $0x14] sm:$0xf]
        %v178 = vunpack.c.l.b16 %v166
        %v179 = vunpack.c.l.b16 %v167
        %v180 = vunpack.c.l.b16 %v168
        %v181 = vunpack.c.l.b16 %v169
        %v182 = vunpack.c.l.b16 %v170
        %v183 = vunpack.c.l.b16 %v171
        %v184 = vpack.c.b16 %v179, %v178
        %v185 = vpack.c.b16 %v181, %v180
        %v186 = vpack.c.b16 %v183, %v182
        %vm187 = vcmask 261120
        %v189 = vsel %vm187, %v165, 0
        %v192 = vsel %vm187, %v184, 0
        %v195 = vsel %vm187, %v185, 0
        %v198 = vsel %vm187, %v186, 0
        %200 = vmatprep.subr.bf16.mxu0 0
        %201 = vmatpush1.bf16.xpose.msra.mxu0 0
        %202 = vmatprep.subr.bf16.mxu0 0
        %203 = vmatpush1.bf16.xpose.msra.mxu0 0
        %204 = vmatprep.subr.bf16.mxu0 0
        %205 = vmatpush1.bf16.xpose.msra.mxu0 0
        %206 = vmatprep.subr.bf16.mxu0 0
        %207 = vmatpush1.bf16.xpose.msra.mxu0 0
        %208 = vmatprep.subr.bf16.mxu0 0
        %209 = vmatpush1.bf16.xpose.msra.mxu0 0
        %210 = vmatprep.subr.bf16.mxu0 0
        %211 = vmatpush1.bf16.xpose.msra.mxu0 %v198
        %212 = vmatprep.subr.bf16.mxu0 0
        %213 = vmatpush1.bf16.xpose.msra.mxu0 %v195
        %214 = vmatprep.subr.bf16.mxu0 0
        %215 = vmatpush1.bf16.xpose.msra.mxu0 %v192
        %216 = vmatprep.subr.bf16.mxu0 0
        %217 = vmatpush2.bf16.xpose.msra.mxu0 0
        %218 = vmatprep.subr.bf16.mxu0 0
        %219 = vmatpush2.bf16.xpose.msra.mxu0 0
        %220 = vmatprep.subr.bf16.mxu0 0
        %221 = vmatpush2.bf16.xpose.msra.mxu0 0
        %222 = vmatprep.subr.bf16.mxu0 0
        %223 = vmatpush2.bf16.xpose.msra.mxu0 0
        %224 = vmatprep.subr.bf16.mxu0 0
        %225 = vmatpush2.bf16.xpose.msra.mxu0 0
        %226 = vmatprep.subr.bf16.mxu0 0
        %227 = vmatpush2.bf16.xpose.msra.mxu0 0
        %228 = vmatprep.subr.bf16.mxu0 0
        %229 = vmatpush2.bf16.xpose.msra.mxu0 0
        %230 = vmatprep.subr.bf16.mxu0 0
        %231 = vmatpush2.bf16.xpose.msra.mxu0 0
        %232 = vmatprep.mubr.bf16.mxu0 0
        %233 = vmatmul.mubr.bf16.gmra.mxu0 %v189
        %v234 = vpop.f32.mrf.mxu0
        %v235 = vadd.f32 0.0, %v234
        %v236 = vpop.f32.mrf.mxu0
        %v237 = vpop.f32.mrf.mxu0
        %v238 = vpop.f32.mrf.mxu0
        %239 = vdwg.mxu0
        %v240 = vpack.c.bf16 %v235, %v235
        %vm241 = vcmask 60416
        %242 = vst.msk [vmem:[%s156] sm:$0xf] %vm241, %v240
        %v244 = vunpack.c.l.b16 %v240
        %v245 = vpack.c.b16 %v244, %v244
        %246 = vrot.lane.b32.xlu0 %v245, 120
        %v247 = vpop.permute.xlu0 %246
        %s249 = scalar_lea.vmem %s156, 4 [#allocation2]
        %250 = vst.msk [vmem:[%s249] sm:$0xf] %vm241, %v247
        %251 = vrot.lane.b32.xlu0 %v245, 112
        %v252 = vpop.permute.xlu0 %251
        %s254 = scalar_lea.vmem %s156, 8 [#allocation2]
        %255 = vst.msk [vmem:[%s254] sm:$0xf] %vm241, %v252
        %256 = vrot.lane.b32.xlu0 %v245, 104
        %v257 = vpop.permute.xlu0 %256
        %s259 = scalar_lea.vmem %s156, 12 [#allocation2]
        %260 = vst.msk [vmem:[%s259] sm:$0xf] %vm241, %v257
        %261 = vrot.lane.b32.xlu0 %v245, 96
        %v262 = vpop.permute.xlu0 %261
        %s264 = scalar_lea.vmem %s156, 16 [#allocation2]
        %265 = vst.msk [vmem:[%s264] sm:$0xf] %vm241, %v262
        %266 = vrot.lane.b32.xlu0 %v245, 88
        %v267 = vpop.permute.xlu0 %266
        %s269 = scalar_lea.vmem %s156, 20 [#allocation2]
        %270 = vst.msk [vmem:[%s269] sm:$0xf] %vm241, %v267
        %s271 = sand.u32 %s87, 1
        %s272 = scalar_lea.sflag [#allocation3], %s271
        %s273 = sand.u32 %s87, 1
        %s274 = smul.addr %s273, 24
        %s275 = scalar_lea.vmem [#allocation2], %s274
        // Predicated region
        $region29: #{tpu_custom_call.1} parent=27 // pred_check
          %p276 = pneg %p97
        $region30: #{tpu_custom_call.1} parent=27 // pred_check_branch
          %278 = sbr.rel (%p276) target = $region32
        $region31: #{tpu_custom_call.1} parent=27 // pred_region
          %s280 = ssub.s32 384, 384
          %281 = vsyncadd %s272, %s280
          %s282 = smul.addr %s20, 6
          %s283 = sadd.s32 %s21, %s282
          %s284 = smul.addr %s283, 64
          %s285 = scalar_lea.hbm %s2, %s284
          %s286 = sshll.u32 %s275, 4
          %s287 = int_to_ptr.vmem [resolvable:$true] %s286
          %292 = dma.vmem_to_hbm [thread:$0]  %s287, 384, %s285, %s272, 64, 64, 4
        $region32: #{tpu_custom_call.1} parent=27 // pred_fallthru
          _
      $region28: #{tpu_custom_call.1} parent=5 // pred_fallthru
        _
      %p293 = scmp.le.s32.totalorder 2, %s11
      // Predicated region
      $region33: #{tpu_custom_call.1} parent=5 // pred_check
        %p294 = pneg %p293
      $region34: #{tpu_custom_call.1} parent=5 // pred_check_branch
        %296 = sbr.rel (%p294) target = $region36
      $region35: #{tpu_custom_call.1} parent=5 // pred_region
        %s297 = ssub.s32 %s11, 2
        // Predicated region
        $region37: #{tpu_custom_call.1} parent=35 // pred_check
          %p298 = pneg %p103
        $region38: #{tpu_custom_call.1} parent=35 // pred_check_branch
          %300 = sbr.rel (%p298) target = $region40
        $region39: #{tpu_custom_call.1} parent=35 // pred_region
          %s301 = sand.u32 %s88, 1
          %s302 = scalar_lea.sflag [#allocation3], %s301
          %s303 = sand.u32 %s88, 1
          %s304 = smul.addr %s303, 24
          %s305 = scalar_lea.vmem [#allocation2], %s304
          %306 = dma.done %s302, 384
        $region40: #{tpu_custom_call.1} parent=35 // pred_fallthru
          _
      $region36: #{tpu_custom_call.1} parent=5 // pred_fallthru
        _
    $region6: #{tpu_custom_call.1} parent=1 // loop_footer
      %s15 = sadd.s32 1, %s11
    $region7: #{tpu_custom_call.1} parent=1 // loop_footer_branch
      %10 = sbr.rel target = $region3
    $region8: #{tpu_custom_call.1} parent=1 // loop_exit
      _
    %307 = vsyncpa [#allocation3], 1
    %s308 = scalar_lea.sflag [#allocation3], 1
    %309 = vsyncpa %s308, 1

</llo_original>
